<compile_context>
chip_gen: v5e
topology: v5e:2x2
jax: 0.10.0
libtpu: 0.0.40
codegen_flags: <defaults>
</compile_context>

<pallas_src>
import functools

import jax
import jax.numpy as jnp
from jax.experimental import pallas as pl
from jax.experimental.pallas import tpu as pltpu


def _round_up(x, m):
    return (x + m - 1) // m * m


def _upper_pairs(num_clusterings):
    """Unordered clustering pairs (ki <= kj), exploiting Gram symmetry."""
    return tuple((i, j) for i in range(num_clusterings)
                 for j in range(i, num_clusterings))


def _divclust_gram_kernel(a_ref, gram_ref, *, num_clusterings, pairs,
                          n_valid, block_rows, steps_per_split, needs_mask):
    """Accumulates per-pair Gram blocks G_p = A_ki^T @ A_kj over the N axis.

    a_ref:    (K, tn, C) tile of assignments (native dtype, f32 or bf16)
    gram_ref: (1, P, C, C) float32 output block, resident across the N axis
    """
    s = pl.program_id(0)      # core split (parallel)
    n = pl.program_id(1)      # N-tile within the split (reduction, "arbitrary")

    @pl.when(n == 0)
    def _init():
        gram_ref[...] = jnp.zeros_like(gram_ref)

    # One (tn, C) slab per clustering; no layout change needed.
    slabs = [a_ref[k] for k in range(num_clusterings)]

    if needs_mask:
        # Zero rows whose *global* sample index is >= N (ragged last tile and
        # any padded trailing tiles from the core split). VPU work, huge slack.
        row0 = (s * steps_per_split + n) * block_rows
        iota = jax.lax.broadcasted_iota(jnp.int32, slabs[0].shape, 0)
        valid = (row0 + iota) < n_valid
        slabs = [jnp.where(valid, x, jnp.zeros_like(x)) for x in slabs]

    for p, (ki, kj) in enumerate(pairs):
        # (tn, C)^T @ (tn, C) -> (C, C); f32 accumulation on the MXU.
        # TODO(synk): transposed-LHS contraction - verify any relayout stays
        # hidden under the DMA before scaling tn beyond ~8K.
        gram_ref[0, p] += jax.lax.dot_general(
            slabs[ki], slabs[kj],
            dimension_numbers=(((0,), (0,)), ((), ())),
            preferred_element_type=jnp.float32)


def divclust_loss_pallas(assignments, threshold, *, block_n=2048,
                         num_core_splits=None,
                         vmem_budget_bytes=10 * 1024 * 1024):
    """assignments: (K, N, C) f32/bf16 soft cluster assignments -> scalar f32 loss."""
    if assignments.dtype not in (jnp.float32, jnp.bfloat16, jnp.float16):
        assignments = assignments.astype(jnp.float32)
    K, N, C = assignments.shape
    itemsize = assignments.dtype.itemsize
    pairs = _upper_pairs(K)
    P = len(pairs)

    # --- N-tile sizing: the biggest tile whose double-buffered input fits the
    #     v5e 16 MiB scoped-VMEM budget (lane dim pads to 128 in VMEM). ---
    row_bytes = K * _round_up(C, 128) * itemsize         # bytes per streamed row
    cap = max(16, (vmem_budget_bytes // (2 * row_bytes)) // 16 * 16)
    tn = max(16, _round_up(min(block_n, cap, _round_up(N, 16)), 16))

    # --- optional split of the N stream across TensorCores (v7x megacore). ---
    if num_core_splits is None:
        num_core_splits = 2 if N >= 8192 else 1          # only split big banks
    S = max(1, int(num_core_splits))
    n_blocks = pl.cdiv(N, tn)
    steps = pl.cdiv(n_blocks, S)
    needs_mask = (S * steps * tn) != N

    kernel = functools.partial(
        _divclust_gram_kernel, num_clusterings=K, pairs=pairs, n_valid=N,
        block_rows=tn, steps_per_split=steps, needs_mask=needs_mask)

    def a_index_map(s, n):
        # Clamp so padded trailing steps re-read (and mask away) the last real
        # block instead of issuing an out-of-bounds DMA.
        return (0, jnp.minimum(s * steps + n, n_blocks - 1), 0)

    gram_parts = pl.pallas_call(
        kernel,
        out_shape=jax.ShapeDtypeStruct((S, P, C, C), jnp.float32),
        grid_spec=pltpu.PrefetchScalarGridSpec(
            num_scalar_prefetch=0,
            grid=(S, steps),
            in_specs=[pl.BlockSpec((K, tn, C), a_index_map)],
            out_specs=pl.BlockSpec((1, P, C, C), lambda s, n: (s, 0, 0, 0)),
        ),
        compiler_params=pltpu.CompilerParams(
            dimension_semantics=("parallel", "arbitrary")),
    )(assignments)

    # --- tiny (K*C)^2 epilogue in plain JAX (off the mem-bound stream). ---
    gram = jnp.sum(gram_parts, axis=0)                   # (P, C, C) float32
    diag_idx = {ki: p for p, (ki, kj) in enumerate(pairs) if ki == kj}
    # F.normalize(assignments, p=2, dim=1, eps=1e-12) folded into a post-matmul
    # rescale: the per-cluster column L2 norms over N are sqrt(Gram diagonal).
    norm_sq = jnp.stack([jnp.diagonal(gram[diag_idx[k]]) for k in range(K)])
    inv_norm = 1.0 / jnp.maximum(jnp.sqrt(norm_sq), 1e-12)

    thr = jnp.float32(threshold)
    total = jnp.float32(0.0)
    for p, (ki, kj) in enumerate(pairs):
        if ki == kj:
            continue
        gn = gram[p] * inv_norm[ki][:, None] * inv_norm[kj][None, :]
        # Ordered pair (ki -> kj): max over kj's clusters, mean over ki's.
        aggr_fwd = jnp.mean(jnp.max(gn, axis=1))
        # Ordered pair (kj -> ki): the transposed block of the symmetric Gram.
        aggr_bwd = jnp.mean(jnp.max(gn, axis=0))
        total = (total + jnp.maximum(aggr_fwd - thr, 0.0)
                 + jnp.maximum(aggr_bwd - thr, 0.0))
    return total


class DivClustLoss:
    """JAX/Pallas port of the torch DivClustLoss forward pass."""

    def __init__(self, threshold=1.0, NMI_target=1.0, NMI_interval=5,
                 threshold_rate=0.99, divclust_mbank_size=10000):
        self.threshold = threshold
        self.NMI_target = NMI_target
        self.NMI_interval = NMI_interval
        self.threshold_rate = threshold_rate
        self.current_threshold = threshold
        self.divclust_mbank_size = divclust_mbank_size
        self.memory_bank = None

    def forward(self, assignments, step=None):
        if assignments.ndim == 2:
            assignments = assignments[None]
        K = assignments.shape[0]
        if K == 1 or self.NMI_target == 1:
            return jnp.float32(0.0), self.threshold, assignments

        # TODO(synk): the NMI-based adaptive threshold update uses sklearn's
        # normalized_mutual_info_score on a host-side numpy memory bank (no
        # Pallas equivalent); the current threshold is kept fixed instead.
        threshold = self.current_threshold
        self.current_threshold = threshold

        if threshold == 1.0:
            return jnp.float32(0.0), threshold, assignments

        loss = divclust_loss_pallas(assignments, threshold)
        return loss, threshold, assignments

    __call__ = forward


def _reference_loss(assignments, threshold):
    """Pure-JAX reference mirroring the torch .loss() semantics."""
    norms = jnp.sqrt(jnp.sum(assignments * assignments, axis=1, keepdims=True))
    a = assignments / jnp.maximum(norms, 1e-12)
    sim = jnp.einsum('qbc,kbd->qkcd', a, a)          # (K, K, C, C)
    Kn = sim.shape[0]
    aggr = sim.max(-1).mean(-1)                      # (K, K)
    off_diag = ~jnp.eye(Kn, dtype=bool)
    return jnp.sum(jnp.where(off_diag,
                             jnp.maximum(aggr - threshold, 0.0), 0.0))


if __name__ == "__main__":
    key = jax.random.PRNGKey(0)
    k1, k2 = jax.random.split(key)

    # Primary case: f32 streaming, single tile.
    K, N, C = 3, 128, 16
    logits = jax.random.normal(k1, (K, N, C), dtype=jnp.float32)
    assignments = jax.nn.softmax(logits, axis=-1)    # soft cluster assignments

    module = DivClustLoss(threshold=0.3, NMI_target=0.5)
    loss, thr, _ = module(assignments)
    loss = jax.block_until_ready(loss)
    ref = jax.block_until_ready(_reference_loss(assignments, thr))
    assert jnp.allclose(loss, ref, rtol=1e-5, atol=1e-5), (loss, ref)

    # Ragged N + 2-way core split: exercises the in-kernel row mask and the
    # leading "parallel" grid axis used for v7x dual-TensorCore streaming.
    N2 = 200
    a2 = jax.nn.softmax(jax.random.normal(k2, (K, N2, C), jnp.float32), axis=-1)
    loss2 = jax.block_until_ready(
        divclust_loss_pallas(a2, 0.3, block_n=64, num_core_splits=2))
    ref2 = jax.block_until_ready(_reference_loss(a2, 0.3))
    assert jnp.allclose(loss2, ref2, rtol=1e-5, atol=1e-5), (loss2, ref2)

    # bf16 streaming path (halves HBM traffic; f32 MXU accumulation).
    loss_bf16 = jax.block_until_ready(
        divclust_loss_pallas(assignments.astype(jnp.bfloat16), thr))
    assert jnp.allclose(loss_bf16, ref, rtol=5e-2, atol=5e-2), (loss_bf16, ref)

    print("KERNEL_OK")
</pallas_src>

<mosaic_0001>
module attributes {stable_mosaic.version = 11 : i64} {
  func.func @_divclust_gram_kernel(%arg0: i32, %arg1: i32, %arg2: memref<3x128x16xf32, #tpu.memory_space<vmem>>, %arg3: memref<1x6x16x16xf32, #tpu.memory_space<vmem>>) attributes {dimension_semantics = [#tpu.dimension_semantics<parallel>, #tpu.dimension_semantics<arbitrary>], iteration_bounds = array<i64: 1, 1>, scalar_prefetch = 0 : i64, scratch_operands = 0 : i64, tpu.core_type = #tpu.core_type<tc>, window_params = [{transform_indices = @transform_0, window_bounds = array<i64: 3, 128, 16>}, {transform_indices = @transform_1, window_bounds = array<i64: 1, 6, 16, 16>}]} {
    %c0_i32 = arith.constant 0 : i32
    %0 = arith.cmpi eq, %arg1, %c0_i32 : i32
    %1 = arith.extui %0 : i1 to i32
    %c0_i32_0 = arith.constant 0 : i32
    %2 = arith.cmpi ne, %1, %c0_i32_0 : i32
    scf.if %2 {
      %cst_57 = arith.constant 0.000000e+00 : f32
      %51 = vector.broadcast %cst_57 : f32 to vector<1x6x16x16xf32>
      %c0_58 = arith.constant 0 : index
      %c0_59 = arith.constant 0 : index
      %c0_60 = arith.constant 0 : index
      %c0_61 = arith.constant 0 : index
      %52 = vector.load %arg3[%c0_58, %c0_59, %c0_60, %c0_61] : memref<1x6x16x16xf32, #tpu.memory_space<vmem>>, vector<1x6x16x16xf32>
      tpu.vector_store %arg3[%c0_58, %c0_59, %c0_60, %c0_61], %51 {strides = array<i32>} : memref<1x6x16x16xf32, #tpu.memory_space<vmem>>, vector<1x6x16x16xf32>,
    } else {
    }
    %c0 = arith.constant 0 : index
    %c0_1 = arith.constant 0 : index
    %c0_2 = arith.constant 0 : index
    %3 = vector.load %arg2[%c0, %c0_1, %c0_2] : memref<3x128x16xf32, #tpu.memory_space<vmem>>, vector<1x128x16xf32>
    %4 = vector.shape_cast %3 : vector<1x128x16xf32> to vector<128x16xf32>
    %c1 = arith.constant 1 : index
    %c0_3 = arith.constant 0 : index
    %c0_4 = arith.constant 0 : index
    %5 = vector.load %arg2[%c1, %c0_3, %c0_4] : memref<3x128x16xf32, #tpu.memory_space<vmem>>, vector<1x128x16xf32>
    %6 = vector.shape_cast %5 : vector<1x128x16xf32> to vector<128x16xf32>
    %c2 = arith.constant 2 : index
    %c0_5 = arith.constant 0 : index
    %c0_6 = arith.constant 0 : index
    %7 = vector.load %arg2[%c2, %c0_5, %c0_6] : memref<3x128x16xf32, #tpu.memory_space<vmem>>, vector<1x128x16xf32>
    %8 = vector.shape_cast %7 : vector<1x128x16xf32> to vector<128x16xf32>
    %c0_7 = arith.constant 0 : index
    %c0_8 = arith.constant 0 : index
    %c0_9 = arith.constant 0 : index
    %c0_10 = arith.constant 0 : index
    %9 = vector.load %arg3[%c0_7, %c0_8, %c0_9, %c0_10] : memref<1x6x16x16xf32, #tpu.memory_space<vmem>>, vector<1x1x16x16xf32>
    %10 = vector.shape_cast %9 : vector<1x1x16x16xf32> to vector<16x16xf32>
    %cst = arith.constant dense<0.000000e+00> : vector<16x16xf32>
    %11 = tpu.matmul %4, %4, %cst {dimension_numbers = #tpu.dot_dimension_numbers<[0], [0], [1], [1], [0, 1, 1, 1], [], []>} : vector<128x16xf32>, vector<128x16xf32>, vector<16x16xf32> -> vector<16x16xf32>
    %12 = arith.addf %10, %11 : vector<16x16xf32>
    %c0_11 = arith.constant 0 : index
    %c0_12 = arith.constant 0 : index
    %c0_13 = arith.constant 0 : index
    %c0_14 = arith.constant 0 : index
    %13 = vector.load %arg3[%c0_11, %c0_12, %c0_13, %c0_14] : memref<1x6x16x16xf32, #tpu.memory_space<vmem>>, vector<1x1x16x16xf32>
    %14 = vector.shape_cast %13 : vector<1x1x16x16xf32> to vector<16x16xf32>
    %15 = vector.shape_cast %12 : vector<16x16xf32> to vector<1x1x16x16xf32>
    tpu.vector_store %arg3[%c0_11, %c0_12, %c0_13, %c0_14], %15 {strides = array<i32>} : memref<1x6x16x16xf32, #tpu.memory_space<vmem>>, vector<1x1x16x16xf32>,
    %c0_15 = arith.constant 0 : index
    %c1_16 = arith.constant 1 : index
    %c0_17 = arith.constant 0 : index
    %c0_18 = arith.constant 0 : index
    %16 = vector.load %arg3[%c0_15, %c1_16, %c0_17, %c0_18] : memref<1x6x16x16xf32, #tpu.memory_space<vmem>>, vector<1x1x16x16xf32>
    %17 = vector.shape_cast %16 : vector<1x1x16x16xf32> to vector<16x16xf32>
    %cst_19 = arith.constant dense<0.000000e+00> : vector<16x16xf32>
    %18 = tpu.matmul %4, %6, %cst_19 {dimension_numbers = #tpu.dot_dimension_numbers<[0], [0], [1], [1], [0, 1, 1, 1], [], []>} : vector<128x16xf32>, vector<128x16xf32>, vector<16x16xf32> -> vector<16x16xf32>
    %19 = arith.addf %17, %18 : vector<16x16xf32>
    %c0_20 = arith.constant 0 : index
    %c1_21 = arith.constant 1 : index
    %c0_22 = arith.constant 0 : index
    %c0_23 = arith.constant 0 : index
    %20 = vector.load %arg3[%c0_20, %c1_21, %c0_22, %c0_23] : memref<1x6x16x16xf32, #tpu.memory_space<vmem>>, vector<1x1x16x16xf32>
    %21 = vector.shape_cast %20 : vector<1x1x16x16xf32> to vector<16x16xf32>
    %22 = vector.shape_cast %19 : vector<16x16xf32> to vector<1x1x16x16xf32>
    tpu.vector_store %arg3[%c0_20, %c1_21, %c0_22, %c0_23], %22 {strides = array<i32>} : memref<1x6x16x16xf32, #tpu.memory_space<vmem>>, vector<1x1x16x16xf32>,
    %c0_24 = arith.constant 0 : index
    %c2_25 = arith.constant 2 : index
    %c0_26 = arith.constant 0 : index
    %c0_27 = arith.constant 0 : index
    %23 = vector.load %arg3[%c0_24, %c2_25, %c0_26, %c0_27] : memref<1x6x16x16xf32, #tpu.memory_space<vmem>>, vector<1x1x16x16xf32>
    %24 = vector.shape_cast %23 : vector<1x1x16x16xf32> to vector<16x16xf32>
    %cst_28 = arith.constant dense<0.000000e+00> : vector<16x16xf32>
    %25 = tpu.matmul %4, %8, %cst_28 {dimension_numbers = #tpu.dot_dimension_numbers<[0], [0], [1], [1], [0, 1, 1, 1], [], []>} : vector<128x16xf32>, vector<128x16xf32>, vector<16x16xf32> -> vector<16x16xf32>
    %26 = arith.addf %24, %25 : vector<16x16xf32>
    %c0_29 = arith.constant 0 : index
    %c2_30 = arith.constant 2 : index
    %c0_31 = arith.constant 0 : index
    %c0_32 = arith.constant 0 : index
    %27 = vector.load %arg3[%c0_29, %c2_30, %c0_31, %c0_32] : memref<1x6x16x16xf32, #tpu.memory_space<vmem>>, vector<1x1x16x16xf32>
    %28 = vector.shape_cast %27 : vector<1x1x16x16xf32> to vector<16x16xf32>
    %29 = vector.shape_cast %26 : vector<16x16xf32> to vector<1x1x16x16xf32>
    tpu.vector_store %arg3[%c0_29, %c2_30, %c0_31, %c0_32], %29 {strides = array<i32>} : memref<1x6x16x16xf32, #tpu.memory_space<vmem>>, vector<1x1x16x16xf32>,
    %c0_33 = arith.constant 0 : index
    %c3 = arith.constant 3 : index
    %c0_34 = arith.constant 0 : index
    %c0_35 = arith.constant 0 : index
    %30 = vector.load %arg3[%c0_33, %c3, %c0_34, %c0_35] : memref<1x6x16x16xf32, #tpu.memory_space<vmem>>, vector<1x1x16x16xf32>
    %31 = vector.shape_cast %30 : vector<1x1x16x16xf32> to vector<16x16xf32>
    %cst_36 = arith.constant dense<0.000000e+00> : vector<16x16xf32>
    %32 = tpu.matmul %6, %6, %cst_36 {dimension_numbers = #tpu.dot_dimension_numbers<[0], [0], [1], [1], [0, 1, 1, 1], [], []>} : vector<128x16xf32>, vector<128x16xf32>, vector<16x16xf32> -> vector<16x16xf32>
    %33 = arith.addf %31, %32 : vector<16x16xf32>
    %c0_37 = arith.constant 0 : index
    %c3_38 = arith.constant 3 : index
    %c0_39 = arith.constant 0 : index
    %c0_40 = arith.constant 0 : index
    %34 = vector.load %arg3[%c0_37, %c3_38, %c0_39, %c0_40] : memref<1x6x16x16xf32, #tpu.memory_space<vmem>>, vector<1x1x16x16xf32>
    %35 = vector.shape_cast %34 : vector<1x1x16x16xf32> to vector<16x16xf32>
    %36 = vector.shape_cast %33 : vector<16x16xf32> to vector<1x1x16x16xf32>
    tpu.vector_store %arg3[%c0_37, %c3_38, %c0_39, %c0_40], %36 {strides = array<i32>} : memref<1x6x16x16xf32, #tpu.memory_space<vmem>>, vector<1x1x16x16xf32>,
    %c0_41 = arith.constant 0 : index
    %c4 = arith.constant 4 : index
    %c0_42 = arith.constant 0 : index
    %c0_43 = arith.constant 0 : index
    %37 = vector.load %arg3[%c0_41, %c4, %c0_42, %c0_43] : memref<1x6x16x16xf32, #tpu.memory_space<vmem>>, vector<1x1x16x16xf32>
    %38 = vector.shape_cast %37 : vector<1x1x16x16xf32> to vector<16x16xf32>
    %cst_44 = arith.constant dense<0.000000e+00> : vector<16x16xf32>
    %39 = tpu.matmul %6, %8, %cst_44 {dimension_numbers = #tpu.dot_dimension_numbers<[0], [0], [1], [1], [0, 1, 1, 1], [], []>} : vector<128x16xf32>, vector<128x16xf32>, vector<16x16xf32> -> vector<16x16xf32>
    %40 = arith.addf %38, %39 : vector<16x16xf32>
    %c0_45 = arith.constant 0 : index
    %c4_46 = arith.constant 4 : index
    %c0_47 = arith.constant 0 : index
    %c0_48 = arith.constant 0 : index
    %41 = vector.load %arg3[%c0_45, %c4_46, %c0_47, %c0_48] : memref<1x6x16x16xf32, #tpu.memory_space<vmem>>, vector<1x1x16x16xf32>
    %42 = vector.shape_cast %41 : vector<1x1x16x16xf32> to vector<16x16xf32>
    %43 = vector.shape_cast %40 : vector<16x16xf32> to vector<1x1x16x16xf32>
    tpu.vector_store %arg3[%c0_45, %c4_46, %c0_47, %c0_48], %43 {strides = array<i32>} : memref<1x6x16x16xf32, #tpu.memory_space<vmem>>, vector<1x1x16x16xf32>,
    %c0_49 = arith.constant 0 : index
    %c5 = arith.constant 5 : index
    %c0_50 = arith.constant 0 : index
    %c0_51 = arith.constant 0 : index
    %44 = vector.load %arg3[%c0_49, %c5, %c0_50, %c0_51] : memref<1x6x16x16xf32, #tpu.memory_space<vmem>>, vector<1x1x16x16xf32>
    %45 = vector.shape_cast %44 : vector<1x1x16x16xf32> to vector<16x16xf32>
    %cst_52 = arith.constant dense<0.000000e+00> : vector<16x16xf32>
    %46 = tpu.matmul %8, %8, %cst_52 {dimension_numbers = #tpu.dot_dimension_numbers<[0], [0], [1], [1], [0, 1, 1, 1], [], []>} : vector<128x16xf32>, vector<128x16xf32>, vector<16x16xf32> -> vector<16x16xf32>
    %47 = arith.addf %45, %46 : vector<16x16xf32>
    %c0_53 = arith.constant 0 : index
    %c5_54 = arith.constant 5 : index
    %c0_55 = arith.constant 0 : index
    %c0_56 = arith.constant 0 : index
    %48 = vector.load %arg3[%c0_53, %c5_54, %c0_55, %c0_56] : memref<1x6x16x16xf32, #tpu.memory_space<vmem>>, vector<1x1x16x16xf32>
    %49 = vector.shape_cast %48 : vector<1x1x16x16xf32> to vector<16x16xf32>
    %50 = vector.shape_cast %47 : vector<16x16xf32> to vector<1x1x16x16xf32>
    tpu.vector_store %arg3[%c0_53, %c5_54, %c0_55, %c0_56], %50 {strides = array<i32>} : memref<1x6x16x16xf32, #tpu.memory_space<vmem>>, vector<1x1x16x16xf32>,
    return
  }
  func.func @transform_0(%arg0: i32, %arg1: i32) -> (i32, i32, i32) {
    %c1_i32 = arith.constant 1 : i32
    %0 = arith.muli %arg0, %c1_i32 : i32
    %1 = arith.addi %0, %arg1 : i32
    %c0_i32 = arith.constant 0 : i32
    %2 = arith.minsi %1, %c0_i32 : i32
    %c0_i32_0 = arith.constant 0 : i32
    %c0_i32_1 = arith.constant 0 : i32
    %c0_i32_2 = arith.constant 0 : i32
    return %c0_i32_0, %2, %c0_i32_1 : i32, i32, i32
  }
  func.func @transform_1(%arg0: i32, %arg1: i32) -> (i32, i32, i32, i32) {
    %c0_i32 = arith.constant 0 : i32
    %c0_i32_0 = arith.constant 0 : i32
    %c0_i32_1 = arith.constant 0 : i32
    %c0_i32_2 = arith.constant 0 : i32
    return %arg0, %c0_i32, %c0_i32_0, %c0_i32_1 : i32, i32, i32, i32
  }
}

</mosaic_0001>

<llo_original>
// kernel: tpu_custom_call.1
$region0: #{tpu_custom_call.1}
  #allocation0 [shape = 'u32[]', space=smem, size = 0x4, offset = 0x4, fixed_abs, tag = 'smem constant byte address 0x4 - core index']
  #allocation1 [shape = 'u32[72,128]{1,0:T(1,128)}', space=vmem, size = 0x9000, scoped, tag = 'internal scratch']
  %s0 = inlined_call_operand.vmem [shape: f32[3,128,16], index: 0, kind: input, shape index: {}]
  %s1 = inlined_call_operand.hbm [shape: f32[1,6,16,16], index: 1, kind: output, shape index: {}]
  %s2 = sld [smem:[#allocation0]]
  $region18: #{tpu_custom_call.1} parent=0
    _
  %s4 = ssub.s32 1, %s2
  %s5 = scalar_select 0, %s4, %s2
  $region1: #{tpu_custom_call.1} parent=0
    #allocation2 [shape = 'u8[49152]{0}', space=vmem, size = 0xc000, scoped, tag = 'output window, operand 0, single buffered']
    #allocation3 [shape = 's32[1]{0}', space=sflag, size = 0x4, scoped, tag = 'scoped memory for tpu_custom_call.1']
    %6 = vsyncpa [#allocation3], 0
    // Predicated region
    $region2: #{tpu_custom_call.1} parent=1 // pred_check
      _
    $region3: #{tpu_custom_call.1} parent=1 // pred_check_branch
      %8 = sbr.rel (0) target = $region5
    $region4: #{tpu_custom_call.1} parent=1 // pred_region
      %s9 = sadd.s32 0, 0
      %p10 = scmp.lt.s32.totalorder %s9, 0
      %s11 = scalar_select %p10, %s9, 0
      %s12 = smul.u32 16, %s11
      %p13 = scmp.lt.s32.totalorder %s12, 15
      %s14 = scalar_select %p13, %s12, 15
      %s15 = smul.addr %s14, 8
      %s16 = scalar_lea.vmem %s0, %s15
      %s17 = sadd.s32 0, 0
      %p18 = scmp.lt.s32.totalorder %s17, 0
      %s19 = scalar_select %p18, %s17, 0
      %s20 = smul.u32 16, %s19
    $region5: #{tpu_custom_call.1} parent=1 // pred_fallthru
      _
    %s21 = sadd.s32 0, 0
    %p22 = scmp.lt.s32.totalorder %s21, 0
    %s23 = scalar_select %p22, %s21, 0
    %s24 = smul.u32 16, %s23
    %p25 = scmp.lt.s32.totalorder %s24, 15
    %s26 = scalar_select %p25, %s24, 15
    %s27 = smul.addr %s26, 8
    %s28 = scalar_lea.vmem %s0, %s27
    %s29 = sadd.s32 0, 0
    %p30 = scmp.lt.s32.totalorder %s29, 0
    %s31 = scalar_select %p30, %s29, 0
    %s32 = smul.u32 16, %s31
    %p33 = scmp.lt.s32.totalorder %s32, 15
    %s34 = scalar_select %p33, %s32, 15
    %s35 = smul.addr %s34, 8
    %s36 = scalar_lea.vmem %s0, %s35
    %s37 = sadd.s32 0, 0
    %p38 = scmp.lt.s32.totalorder %s37, 0
    %s39 = scalar_select %p38, %s37, 0
    %s40 = smul.u32 16, %s39
    %p41 = scmp.eq.s32.totalorder 0, 0
    // Predicated region
    $region6: #{tpu_custom_call.1} parent=1 // pred_check
      %p42 = pneg %p41
    $region7: #{tpu_custom_call.1} parent=1 // pred_check_branch
      %44 = sbr.rel (%p42) target = $region9
    $region8: #{tpu_custom_call.1} parent=1 // pred_region
      %vm45 = vcmask 130048
      %46 = vst.msk [vmem:[#allocation2] sm:$0xff] %vm45, 0.0
      %47 = vst.msk [vmem:[#allocation2 + $0x8] sm:$0xff] %vm45, 0.0
      %48 = vst.msk [vmem:[#allocation2 + $0x10] sm:$0xff] %vm45, 0.0
      %49 = vst.msk [vmem:[#allocation2 + $0x18] sm:$0xff] %vm45, 0.0
      %50 = vst.msk [vmem:[#allocation2 + $0x20] sm:$0xff] %vm45, 0.0
      %51 = vst.msk [vmem:[#allocation2 + $0x28] sm:$0xff] %vm45, 0.0
      %52 = vst.msk [vmem:[#allocation2 + $0x30] sm:$0xff] %vm45, 0.0
      %53 = vst.msk [vmem:[#allocation2 + $0x38] sm:$0xff] %vm45, 0.0
      %54 = vst.msk [vmem:[#allocation2 + $0x40] sm:$0xff] %vm45, 0.0
      %55 = vst.msk [vmem:[#allocation2 + $0x48] sm:$0xff] %vm45, 0.0
      %56 = vst.msk [vmem:[#allocation2 + $0x50] sm:$0xff] %vm45, 0.0
      %57 = vst.msk [vmem:[#allocation2 + $0x58] sm:$0xff] %vm45, 0.0
    $region9: #{tpu_custom_call.1} parent=1 // pred_fallthru
      _
    %v58 = vld [vmem:[%s36] sm:$0xff]
    %v59 = vld [vmem:[%s36 + $0x8] sm:$0xff]
    %v60 = vld [vmem:[%s36 + $0x10] sm:$0xff]
    %v61 = vld [vmem:[%s36 + $0x18] sm:$0xff]
    %v62 = vld [vmem:[%s36 + $0x20] sm:$0xff]
    %v63 = vld [vmem:[%s36 + $0x28] sm:$0xff]
    %v64 = vld [vmem:[%s36 + $0x30] sm:$0xff]
    %v65 = vld [vmem:[%s36 + $0x38] sm:$0xff]
    %v66 = vld [vmem:[%s36 + $0x40] sm:$0xff]
    %v67 = vld [vmem:[%s36 + $0x48] sm:$0xff]
    %v68 = vld [vmem:[%s36 + $0x50] sm:$0xff]
    %v69 = vld [vmem:[%s36 + $0x58] sm:$0xff]
    %v70 = vld [vmem:[%s36 + $0x60] sm:$0xff]
    %v71 = vld [vmem:[%s36 + $0x68] sm:$0xff]
    %v72 = vld [vmem:[%s36 + $0x70] sm:$0xff]
    %v73 = vld [vmem:[%s36 + $0x78] sm:$0xff]
    %s74 = scalar_lea.vmem %s36, 128
    %v75 = vld [vmem:[%s74] sm:$0xff]
    %v76 = vld [vmem:[%s74 + $0x8] sm:$0xff]
    %v77 = vld [vmem:[%s74 + $0x10] sm:$0xff]
    %v78 = vld [vmem:[%s74 + $0x18] sm:$0xff]
    %v79 = vld [vmem:[%s74 + $0x20] sm:$0xff]
    %v80 = vld [vmem:[%s74 + $0x28] sm:$0xff]
    %v81 = vld [vmem:[%s74 + $0x30] sm:$0xff]
    %v82 = vld [vmem:[%s74 + $0x38] sm:$0xff]
    %v83 = vld [vmem:[%s74 + $0x40] sm:$0xff]
    %v84 = vld [vmem:[%s74 + $0x48] sm:$0xff]
    %v85 = vld [vmem:[%s74 + $0x50] sm:$0xff]
    %v86 = vld [vmem:[%s74 + $0x58] sm:$0xff]
    %v87 = vld [vmem:[%s74 + $0x60] sm:$0xff]
    %v88 = vld [vmem:[%s74 + $0x68] sm:$0xff]
    %v89 = vld [vmem:[%s74 + $0x70] sm:$0xff]
    %v90 = vld [vmem:[%s74 + $0x78] sm:$0xff]
    %s91 = scalar_lea.vmem %s36, 256
    %v92 = vld [vmem:[%s91] sm:$0xff]
    %v93 = vld [vmem:[%s91 + $0x8] sm:$0xff]
    %v94 = vld [vmem:[%s91 + $0x10] sm:$0xff]
    %v95 = vld [vmem:[%s91 + $0x18] sm:$0xff]
    %v96 = vld [vmem:[%s91 + $0x20] sm:$0xff]
    %v97 = vld [vmem:[%s91 + $0x28] sm:$0xff]
    %v98 = vld [vmem:[%s91 + $0x30] sm:$0xff]
    %v99 = vld [vmem:[%s91 + $0x38] sm:$0xff]
    %v100 = vld [vmem:[%s91 + $0x40] sm:$0xff]
    %v101 = vld [vmem:[%s91 + $0x48] sm:$0xff]
    %v102 = vld [vmem:[%s91 + $0x50] sm:$0xff]
    %v103 = vld [vmem:[%s91 + $0x58] sm:$0xff]
    %v104 = vld [vmem:[%s91 + $0x60] sm:$0xff]
    %v105 = vld [vmem:[%s91 + $0x68] sm:$0xff]
    %v106 = vld [vmem:[%s91 + $0x70] sm:$0xff]
    %v107 = vld [vmem:[%s91 + $0x78] sm:$0xff]
    %v108 = vld [vmem:[#allocation2] sm:$0xff]
    %v109 = vld [vmem:[#allocation2 + $0x8] sm:$0xff]
    %110 = vxpose.xlu0.b32.start [1/16] %v58, 128
    %111 = vxpose.xlu0.b32.cont [2/16] %v59, 128
    %112 = vxpose.xlu0.b32.cont [3/16] %v60, 128
    %113 = vxpose.xlu0.b32.cont [4/16] %v61, 128
    %114 = vxpose.xlu0.b32.cont [5/16] %v62, 128
    %115 = vxpose.xlu0.b32.cont [6/16] %v63, 128
    %116 = vxpose.xlu0.b32.cont [7/16] %v64, 128
    %117 = vxpose.xlu0.b32.cont [8/16] %v65, 128
    %118 = vxpose.xlu0.b32.cont [9/16] %v66, 128
    %119 = vxpose.xlu0.b32.cont [10/16] %v67, 128
    %120 = vxpose.xlu0.b32.cont [11/16] %v68, 128
    %121 = vxpose.xlu0.b32.cont [12/16] %v69, 128
    %122 = vxpose.xlu0.b32.cont [13/16] %v70, 128
    %123 = vxpose.xlu0.b32.cont [14/16] %v71, 128
    %124 = vxpose.xlu0.b32.cont [15/16] %v72, 128
    %125 = vxpose.xlu0.b32.end [16/16] %v73, 128
    %v126 = vpop.trf.xlu0
    %v127 = vpop.trf.xlu0
    %v128 = vpop.trf.xlu0
    %v129 = vpop.trf.xlu0
    %v130 = vpop.trf.xlu0
    %v131 = vpop.trf.xlu0
    %v132 = vpop.trf.xlu0
    %v133 = vpop.trf.xlu0
    %v134 = vpop.trf.xlu0
    %v135 = vpop.trf.xlu0
    %v136 = vpop.trf.xlu0
    %v137 = vpop.trf.xlu0
    %v138 = vpop.trf.xlu0
    %v139 = vpop.trf.xlu0
    %v140 = vpop.trf.xlu0
    %v141 = vpop.trf.xlu0
    %142 = vmatpush.msra.mxu0 %v73
    %143 = vmatpush.msra.mxu0 %v72
    %144 = vmatpush.msra.mxu0 %v71
    %145 = vmatpush.msra.mxu0 %v70
    %146 = vmatpush.msra.mxu0 %v69
    %147 = vmatpush.msra.mxu0 %v68
    %148 = vmatpush.msra.mxu0 %v67
    %149 = vmatpush.msra.mxu0 %v66
    %150 = vmatpush.msra.mxu0 %v65
    %151 = vmatpush.msra.mxu0 %v64
    %152 = vmatpush.msra.mxu0 %v63
    %153 = vmatpush.msra.mxu0 %v62
    %154 = vmatpush.msra.mxu0 %v61
    %155 = vmatpush.msra.mxu0 %v60
    %156 = vmatpush.msra.mxu0 %v59
    %157 = vmatpush.msra.mxu0 %v58
    %158 = vmatmul.f32.gmra.mxu0 %v126
    %v159 = vpop.f32.mrf.mxu0
    %v160 = vadd.f32 0.0, %v159
    %161 = vmatmul.f32.gmra.mxu0 %v127
    %v162 = vpop.f32.mrf.mxu0
    %v163 = vadd.f32 0.0, %v162
    %164 = vdwg.mxu0
    %v165 = vadd.f32 %v108, %v160
    %v166 = vadd.f32 %v109, %v163
    %vm167 = vcmask 130048
    %168 = vst.msk [vmem:[#allocation2] sm:$0xff] %vm167, %v165
    %169 = vst.msk [vmem:[#allocation2 + $0x8] sm:$0xff] %vm167, %v166
    %s170 = scalar_lea.vmem [#allocation2], 16
    %v171 = vld [vmem:[%s170] sm:$0xff]
    %v172 = vld [vmem:[%s170 + $0x8] sm:$0xff]
    %173 = vmatpush.msra.mxu0 %v90
    %174 = vmatpush.msra.mxu0 %v89
    %175 = vmatpush.msra.mxu0 %v88
    %176 = vmatpush.msra.mxu0 %v87
    %177 = vmatpush.msra.mxu0 %v86
    %178 = vmatpush.msra.mxu0 %v85
    %179 = vmatpush.msra.mxu0 %v84
    %180 = vmatpush.msra.mxu0 %v83
    %181 = vmatpush.msra.mxu0 %v82
    %182 = vmatpush.msra.mxu0 %v81
    %183 = vmatpush.msra.mxu0 %v80
    %184 = vmatpush.msra.mxu0 %v79
    %185 = vmatpush.msra.mxu0 %v78
    %186 = vmatpush.msra.mxu0 %v77
    %187 = vmatpush.msra.mxu0 %v76
    %188 = vmatpush.msra.mxu0 %v75
    %189 = vmatmul.f32.gmra.mxu0 %v126
    %v190 = vpop.f32.mrf.mxu0
    %v191 = vadd.f32 0.0, %v190
    %192 = vmatmul.f32.gmra.mxu0 %v127
    %v193 = vpop.f32.mrf.mxu0
    %v194 = vadd.f32 0.0, %v193
    %195 = vdwg.mxu0
    %v196 = vadd.f32 %v171, %v191
    %v197 = vadd.f32 %v172, %v194
    %198 = vst.msk [vmem:[%s170] sm:$0xff] %vm167, %v196
    %199 = vst.msk [vmem:[%s170 + $0x8] sm:$0xff] %vm167, %v197
    %s200 = scalar_lea.vmem [#allocation2], 32
    %v201 = vld [vmem:[%s200] sm:$0xff]
    %v202 = vld [vmem:[%s200 + $0x8] sm:$0xff]
    %203 = vmatpush.msra.mxu0 %v107
    %204 = vmatpush.msra.mxu0 %v106
    %205 = vmatpush.msra.mxu0 %v105
    %206 = vmatpush.msra.mxu0 %v104
    %207 = vmatpush.msra.mxu0 %v103
    %208 = vmatpush.msra.mxu0 %v102
    %209 = vmatpush.msra.mxu0 %v101
    %210 = vmatpush.msra.mxu0 %v100
    %211 = vmatpush.msra.mxu0 %v99
    %212 = vmatpush.msra.mxu0 %v98
    %213 = vmatpush.msra.mxu0 %v97
    %214 = vmatpush.msra.mxu0 %v96
    %215 = vmatpush.msra.mxu0 %v95
    %216 = vmatpush.msra.mxu0 %v94
    %217 = vmatpush.msra.mxu0 %v93
    %218 = vmatpush.msra.mxu0 %v92
    %219 = vmatmul.f32.gmra.mxu0 %v126
    %v220 = vpop.f32.mrf.mxu0
    %v221 = vadd.f32 0.0, %v220
    %222 = vmatmul.f32.gmra.mxu0 %v127
    %v223 = vpop.f32.mrf.mxu0
    %v224 = vadd.f32 0.0, %v223
    %225 = vdwg.mxu0
    %v226 = vadd.f32 %v201, %v221
    %v227 = vadd.f32 %v202, %v224
    %228 = vst.msk [vmem:[%s200] sm:$0xff] %vm167, %v226
    %229 = vst.msk [vmem:[%s200 + $0x8] sm:$0xff] %vm167, %v227
    %s230 = scalar_lea.vmem [#allocation2], 48
    %v231 = vld [vmem:[%s230] sm:$0xff]
    %v232 = vld [vmem:[%s230 + $0x8] sm:$0xff]
    %233 = vxpose.xlu0.b32.start [1/16] %v75, 128
    %234 = vxpose.xlu0.b32.cont [2/16] %v76, 128
    %235 = vxpose.xlu0.b32.cont [3/16] %v77, 128
    %236 = vxpose.xlu0.b32.cont [4/16] %v78, 128
    %237 = vxpose.xlu0.b32.cont [5/16] %v79, 128
    %238 = vxpose.xlu0.b32.cont [6/16] %v80, 128
    %239 = vxpose.xlu0.b32.cont [7/16] %v81, 128
    %240 = vxpose.xlu0.b32.cont [8/16] %v82, 128
    %241 = vxpose.xlu0.b32.cont [9/16] %v83, 128
    %242 = vxpose.xlu0.b32.cont [10/16] %v84, 128
    %243 = vxpose.xlu0.b32.cont [11/16] %v85, 128
    %244 = vxpose.xlu0.b32.cont [12/16] %v86, 128
    %245 = vxpose.xlu0.b32.cont [13/16] %v87, 128
    %246 = vxpose.xlu0.b32.cont [14/16] %v88, 128
    %247 = vxpose.xlu0.b32.cont [15/16] %v89, 128
    %248 = vxpose.xlu0.b32.end [16/16] %v90, 128
    %v249 = vpop.trf.xlu0
    %v250 = vpop.trf.xlu0
    %v251 = vpop.trf.xlu0
    %v252 = vpop.trf.xlu0
    %v253 = vpop.trf.xlu0
    %v254 = vpop.trf.xlu0
    %v255 = vpop.trf.xlu0
    %v256 = vpop.trf.xlu0
    %v257 = vpop.trf.xlu0
    %v258 = vpop.trf.xlu0
    %v259 = vpop.trf.xlu0
    %v260 = vpop.trf.xlu0
    %v261 = vpop.trf.xlu0
    %v262 = vpop.trf.xlu0
    %v263 = vpop.trf.xlu0
    %v264 = vpop.trf.xlu0
    %265 = vmatpush.msra.mxu0 %v90
    %266 = vmatpush.msra.mxu0 %v89
    %267 = vmatpush.msra.mxu0 %v88
    %268 = vmatpush.msra.mxu0 %v87
    %269 = vmatpush.msra.mxu0 %v86
    %270 = vmatpush.msra.mxu0 %v85
    %271 = vmatpush.msra.mxu0 %v84
    %272 = vmatpush.msra.mxu0 %v83
    %273 = vmatpush.msra.mxu0 %v82
    %274 = vmatpush.msra.mxu0 %v81
    %275 = vmatpush.msra.mxu0 %v80
    %276 = vmatpush.msra.mxu0 %v79
    %277 = vmatpush.msra.mxu0 %v78
    %278 = vmatpush.msra.mxu0 %v77
    %279 = vmatpush.msra.mxu0 %v76
    %280 = vmatpush.msra.mxu0 %v75
    %281 = vmatmul.f32.gmra.mxu0 %v249
    %v282 = vpop.f32.mrf.mxu0
    %v283 = vadd.f32 0.0, %v282
    %284 = vmatmul.f32.gmra.mxu0 %v250
    %v285 = vpop.f32.mrf.mxu0
    %v286 = vadd.f32 0.0, %v285
    %287 = vdwg.mxu0
    %v288 = vadd.f32 %v231, %v283
    %v289 = vadd.f32 %v232, %v286
    %290 = vst.msk [vmem:[%s230] sm:$0xff] %vm167, %v288
    %291 = vst.msk [vmem:[%s230 + $0x8] sm:$0xff] %vm167, %v289
    %s292 = scalar_lea.vmem [#allocation2], 64
    %v293 = vld [vmem:[%s292] sm:$0xff]
    %v294 = vld [vmem:[%s292 + $0x8] sm:$0xff]
    %295 = vmatpush.msra.mxu0 %v107
    %296 = vmatpush.msra.mxu0 %v106
    %297 = vmatpush.msra.mxu0 %v105
    %298 = vmatpush.msra.mxu0 %v104
    %299 = vmatpush.msra.mxu0 %v103
    %300 = vmatpush.msra.mxu0 %v102
    %301 = vmatpush.msra.mxu0 %v101
    %302 = vmatpush.msra.mxu0 %v100
    %303 = vmatpush.msra.mxu0 %v99
    %304 = vmatpush.msra.mxu0 %v98
    %305 = vmatpush.msra.mxu0 %v97
    %306 = vmatpush.msra.mxu0 %v96
    %307 = vmatpush.msra.mxu0 %v95
    %308 = vmatpush.msra.mxu0 %v94
    %309 = vmatpush.msra.mxu0 %v93
    %310 = vmatpush.msra.mxu0 %v92
    %311 = vmatmul.f32.gmra.mxu0 %v249
    %v312 = vpop.f32.mrf.mxu0
    %v313 = vadd.f32 0.0, %v312
    %314 = vmatmul.f32.gmra.mxu0 %v250
    %v315 = vpop.f32.mrf.mxu0
    %v316 = vadd.f32 0.0, %v315
    %317 = vdwg.mxu0
    %v318 = vadd.f32 %v293, %v313
    %v319 = vadd.f32 %v294, %v316
    %320 = vst.msk [vmem:[%s292] sm:$0xff] %vm167, %v318
    %321 = vst.msk [vmem:[%s292 + $0x8] sm:$0xff] %vm167, %v319
    %s322 = scalar_lea.vmem [#allocation2], 80
    %v323 = vld [vmem:[%s322] sm:$0xff]
    %v324 = vld [vmem:[%s322 + $0x8] sm:$0xff]
    %325 = vxpose.xlu0.b32.start [1/16] %v92, 128
    %326 = vxpose.xlu0.b32.cont [2/16] %v93, 128
    %327 = vxpose.xlu0.b32.cont [3/16] %v94, 128
    %328 = vxpose.xlu0.b32.cont [4/16] %v95, 128
    %329 = vxpose.xlu0.b32.cont [5/16] %v96, 128
    %330 = vxpose.xlu0.b32.cont [6/16] %v97, 128
    %331 = vxpose.xlu0.b32.cont [7/16] %v98, 128
    %332 = vxpose.xlu0.b32.cont [8/16] %v99, 128
    %333 = vxpose.xlu0.b32.cont [9/16] %v100, 128
    %334 = vxpose.xlu0.b32.cont [10/16] %v101, 128
    %335 = vxpose.xlu0.b32.cont [11/16] %v102, 128
    %336 = vxpose.xlu0.b32.cont [12/16] %v103, 128
    %337 = vxpose.xlu0.b32.cont [13/16] %v104, 128
    %338 = vxpose.xlu0.b32.cont [14/16] %v105, 128
    %339 = vxpose.xlu0.b32.cont [15/16] %v106, 128
    %340 = vxpose.xlu0.b32.end [16/16] %v107, 128
    %v341 = vpop.trf.xlu0
    %v342 = vpop.trf.xlu0
    %v343 = vpop.trf.xlu0
    %v344 = vpop.trf.xlu0
    %v345 = vpop.trf.xlu0
    %v346 = vpop.trf.xlu0
    %v347 = vpop.trf.xlu0
    %v348 = vpop.trf.xlu0
    %v349 = vpop.trf.xlu0
    %v350 = vpop.trf.xlu0
    %v351 = vpop.trf.xlu0
    %v352 = vpop.trf.xlu0
    %v353 = vpop.trf.xlu0
    %v354 = vpop.trf.xlu0
    %v355 = vpop.trf.xlu0
    %v356 = vpop.trf.xlu0
    %357 = vmatpush.msra.mxu0 %v107
    %358 = vmatpush.msra.mxu0 %v106
    %359 = vmatpush.msra.mxu0 %v105
    %360 = vmatpush.msra.mxu0 %v104
    %361 = vmatpush.msra.mxu0 %v103
    %362 = vmatpush.msra.mxu0 %v102
    %363 = vmatpush.msra.mxu0 %v101
    %364 = vmatpush.msra.mxu0 %v100
    %365 = vmatpush.msra.mxu0 %v99
    %366 = vmatpush.msra.mxu0 %v98
    %367 = vmatpush.msra.mxu0 %v97
    %368 = vmatpush.msra.mxu0 %v96
    %369 = vmatpush.msra.mxu0 %v95
    %370 = vmatpush.msra.mxu0 %v94
    %371 = vmatpush.msra.mxu0 %v93
    %372 = vmatpush.msra.mxu0 %v92
    %373 = vmatmul.f32.gmra.mxu0 %v341
    %v374 = vpop.f32.mrf.mxu0
    %v375 = vadd.f32 0.0, %v374
    %376 = vmatmul.f32.gmra.mxu0 %v342
    %v377 = vpop.f32.mrf.mxu0
    %v378 = vadd.f32 0.0, %v377
    %379 = vdwg.mxu0
    %v380 = vadd.f32 %v323, %v375
    %v381 = vadd.f32 %v324, %v378
    %382 = vst.msk [vmem:[%s322] sm:$0xff] %vm167, %v380
    %383 = vst.msk [vmem:[%s322 + $0x8] sm:$0xff] %vm167, %v381
    // Predicated region
    $region10: #{tpu_custom_call.1} parent=1 // pred_check
      _
    $region11: #{tpu_custom_call.1} parent=1 // pred_check_branch
      %385 = sbr.rel (0) target = $region13
    $region12: #{tpu_custom_call.1} parent=1 // pred_region
      %387 = vsyncadd [#allocation3], 0
      %s388 = sshll.u32 [#allocation2], 4
      %s389 = int_to_ptr.vmem [resolvable:$true] %s388
      %s390 = sshll.u32 %s1, 4
      %s391 = int_to_ptr.hbm [resolvable:$true] %s390
      %396 = dma.vmem_to_hbm [thread:$0]  %s389, 1536, %s391, [#allocation3], 128, 128, 8
    $region13: #{tpu_custom_call.1} parent=1 // pred_fallthru
      _
    // Predicated region
    $region14: #{tpu_custom_call.1} parent=1 // pred_check
      _
    $region15: #{tpu_custom_call.1} parent=1 // pred_check_branch
      %398 = sbr.rel (0) target = $region17
    $region16: #{tpu_custom_call.1} parent=1 // pred_region
      %400 = dma.done [#allocation3], 1536
    $region17: #{tpu_custom_call.1} parent=1 // pred_fallthru
      _
    %401 = vsyncpa [#allocation3], 1

</llo_original>
